<compile_context>
chip_gen: v6e
topology: v6e:2x2x1
jax: 0.10.0
libtpu: 0.0.40
codegen_flags: <defaults>
</compile_context>

<pallas_src>
import functools

import jax
import jax.numpy as jnp
from jax.experimental import pallas as pl
from jax.experimental.pallas import tpu as pltpu


# ---- hyper-parameters (from DKD.__init__ defaults) --------------------------
CE_LOSS_WEIGHT = 0.5
TEMPERATURE = 1.0
ALPHA = 0.5
BETA = 0.5
MODE = None          # None -> alpha * tckd + beta * nckd

_NEG_PAD = -1e30     # bias for padded class lanes: exp underflows to exactly 0


def _round_up(a, m):
    return (a + m - 1) // m * m


def dkd_kernel(x_ref, tgt_ref, w_ref, b_ref, loss_ref, slogits_ref, *, batch_size):
    i = pl.program_id(0)
    TB = x_ref.shape[0]
    Cp = slogits_ref.shape[1]          # class dim padded to a multiple of 128
    T = TEMPERATURE
    inv_T = 1.0 / T
    T2 = T * T
    tiny = jnp.float32(1e-30)

    # --- fused student|teacher logits: one bf16 MXU matmul, f32 accumulate ----
    # w_ref = [Ws | Wt] (padded class columns zero; padded bias = -1e30 so those
    # lanes act like -inf logits and vanish under every softmax below).
    logits = jnp.dot(x_ref[...], w_ref[...],
                     preferred_element_type=jnp.float32) + b_ref[...]   # [TB, 2Cp]
    s_logits = logits[:, :Cp]          # lane-aligned (Cp multiple of 128) slices
    t_logits = logits[:, Cp:]

    # --- boolean gt mask (no float cast / full-tile mask multiplies) -----------
    tgt = tgt_ref[...]                                            # [TB, 1] int32
    cls = jax.lax.broadcasted_iota(jnp.int32, (TB, Cp), 1)
    gt = cls == tgt

    # Row-validity mask for batch padding (dummy rows contribute 0 to the loss).
    row = i * TB + jax.lax.broadcasted_iota(jnp.int32, (TB, 1), 0)
    valid = row < batch_size

    # --- shared stable-softmax pieces (computed once for CE/TCKD/NCKD) --------
    if T == 1.0:
        s_T, t_T = s_logits, t_logits
    else:
        s_T, t_T = s_logits * inv_T, t_logits * inv_T
    max_s = jnp.max(s_T, axis=1, keepdims=True)
    max_t = jnp.max(t_T, axis=1, keepdims=True)
    e_s = jnp.exp(s_T - max_s)                      # only 2 full-tile exps total
    e_t = jnp.exp(t_T - max_t)
    sum_s = jnp.sum(e_s, axis=1, keepdims=True)
    sum_t = jnp.sum(e_t, axis=1, keepdims=True)
    log_sum_s = jnp.log(sum_s)
    log_sum_t = jnp.log(sum_t)

    # Non-target softmax mass via masked reductions (no catastrophic
    # cancellation when the gt class dominates); e_*_nt is reused by NCKD.
    e_s_nt = jnp.where(gt, 0.0, e_s)
    e_t_nt = jnp.where(gt, 0.0, e_t)
    sum_s2 = jnp.maximum(jnp.sum(e_s_nt, axis=1, keepdims=True), tiny)
    sum_t2 = jnp.maximum(jnp.sum(e_t_nt, axis=1, keepdims=True), tiny)
    log_sum_s2 = jnp.log(sum_s2)
    log_sum_t2 = jnp.log(sum_t2)

    # Exact gt logits via select-reduce (bool mask, XLU has slack).
    s_gt = jnp.sum(jnp.where(gt, s_logits, 0.0), axis=1, keepdims=True)
    t_gt = jnp.sum(jnp.where(gt, t_logits, 0.0), axis=1, keepdims=True)
    s_gt_T = s_gt if T == 1.0 else s_gt * inv_T
    t_gt_T = t_gt if T == 1.0 else t_gt * inv_T
    e_t_gt = jnp.exp(t_gt_T - max_t)                # [TB,1] cheap exp

    log_ps_g = s_gt_T - max_s - log_sum_s           # exact log softmax @ target
    log_pt_g = t_gt_T - max_t - log_sum_t

    # --- cross entropy on raw student logits ----------------------------------
    if T == 1.0:
        ce_row = -log_ps_g                          # reuse T-softmax pieces
    else:
        max_s0 = jnp.max(s_logits, axis=1, keepdims=True)
        lse0 = max_s0 + jnp.log(jnp.sum(jnp.exp(s_logits - max_s0),
                                        axis=1, keepdims=True))
        ce_row = lse0 - s_gt

    # --- TCKD: binary (gt vs rest) KL -- exact per-row divisions ([TB,1]) ------
    pt_g = e_t_gt / sum_t                           # teacher P(gt)
    pt_o = sum_t2 / sum_t                           # teacher P(other)
    d_g = log_pt_g - log_ps_g
    d_o = (log_sum_t2 - log_sum_t) - (log_sum_s2 - log_sum_s)
    # F.kl_div semantics: zero-probability targets contribute exactly 0.
    tckd_row = (jnp.where(pt_g > 0.0, pt_g * d_g, 0.0)
                + jnp.where(pt_o > 0.0, pt_o * d_o, 0.0))

    # --- NCKD: KL over non-target classes --------------------------------------
    # log p_t2 - log p_s2 = (t_T - s_T) + rowconst with
    #   rowconst = (max_s - max_t) + (log_sum_s2 - log_sum_t2)
    # sum(p_t2 * (diff + rowconst)) = sum(e_t_nt * diff)/sum_t2 + rowconst.
    # Only 2 extra full-tile VPU ops (sub + mul); normalization done per-row.
    rowconst = (max_s - max_t) + (log_sum_s2 - log_sum_t2)
    nckd_dot = jnp.sum(e_t_nt * (t_T - s_T), axis=1, keepdims=True)
    nckd_row = nckd_dot / sum_t2 + rowconst

    if MODE == 'tckd_only':
        dkd_row = ALPHA * tckd_row
    elif MODE == 'nckd_only':
        dkd_row = BETA * nckd_row
    else:
        dkd_row = ALPHA * tckd_row + BETA * nckd_row

    # Per-row combined loss; divide by the GLOBAL batch size (not tile size).
    combined = CE_LOSS_WEIGHT * ce_row + T2 * dkd_row
    tile_partial = jnp.sum(jnp.where(valid, combined, 0.0)) / batch_size

    # Lane-dense (8,128) partial-loss block: single splat store, the wrapper
    # reads element [0,0] of each block. Keeps the batch grid axis "parallel".
    loss_ref[...] = jnp.broadcast_to(tile_partial, (8, 128)).astype(jnp.float32)

    slogits_ref[...] = s_logits.astype(slogits_ref.dtype)


def dkd_pack_params(ws, bs, wt, bt, *, k_align=256):
    """Fuse [Ws | Wt] into one MXU operand.  Call ONCE and cache across steps."""
    D, C = ws.shape
    Cp = _round_up(C, 128)               # lane-align the class dim
    Dp = _round_up(D, k_align)           # full MXU K cadence (256 on v6e/v7x)
    wf = jnp.zeros((Dp, 2 * Cp), jnp.bfloat16)
    wf = wf.at[:D, :C].set(ws.astype(jnp.bfloat16))
    wf = wf.at[:D, Cp:Cp + C].set(wt.astype(jnp.bfloat16))
    bf = jnp.full((1, 2 * Cp), _NEG_PAD, jnp.float32)
    bf = bf.at[0, :C].set(bs.astype(jnp.float32))
    bf = bf.at[0, Cp:Cp + C].set(bt.astype(jnp.float32))
    return wf, bf, C


def _vmem_budget_bytes():
    # v5e/v6e: 128 MiB -> 96 MiB limit; v7x: 64 MiB -> 48 MiB limit.
    try:
        cap = int(pltpu.get_tpu_info().vmem_capacity_bytes)
    except Exception:
        cap = 64 * 1024 * 1024
    return min((cap * 3) // 4, 96 * 1024 * 1024)


def _pick_tile_b(B, Dp, Cp, tile_b, out_itemsize, budget):
    """Largest batch tile <= tile_b whose rough VMEM footprint fits `budget`."""
    TB = min(_round_up(tile_b, 8), _round_up(B, 8))

    def est(tb):
        resident = Dp * 2 * Cp * 2 + 2 * Cp * 4              # Buffered(1) weights+bias
        streams = 2 * tb * Dp * 2 + 2 * tb * 4               # x / targets, double-buffered
        outs = 2 * tb * Cp * out_itemsize + 2 * 8 * 128 * 4  # logits + loss, double-buffered
        temps = tb * 2 * Cp * 4 + 10 * tb * Cp * 4           # live f32 intermediates (rough)
        return resident + streams + outs + temps

    while TB > 128 and est(TB) > budget:
        TB = max(128, _round_up(TB // 2, 8))
    return TB


@functools.partial(jax.jit, static_argnames=("num_classes", "tile_b", "logits_dtype"))
def dkd_forward_packed(x, targets, wf, bf, *, num_classes, tile_b=256,
                       logits_dtype=None):
    """Returns (total_loss, student_logits) like DKD.forward_train (training).

    `wf`/`bf` come from dkd_pack_params (pack once, reuse every step).
    `logits_dtype=jnp.bfloat16` halves the student-logits HBM writeback.
    """
    B, D = x.shape
    Dp, two_cp = wf.shape
    Cp = two_cp // 2
    C = num_classes
    out_dtype = x.dtype if logits_dtype is None else jnp.dtype(logits_dtype)
    out_itemsize = jnp.dtype(out_dtype).itemsize

    vmem_limit = _vmem_budget_bytes()
    TB = _pick_tile_b(B, Dp, Cp, tile_b, out_itemsize, vmem_limit - (8 << 20))
    Bp = _round_up(B, TB)
    nb = Bp // TB

    # Batch/K pad only when needed (zero K-columns contribute nothing).
    xb = x.astype(jnp.bfloat16)
    if Bp != B or Dp != D:
        xb = jnp.pad(xb, ((0, Bp - B), (0, Dp - D)))
    tp = targets.reshape(-1).astype(jnp.int32).reshape(B, 1)
    if Bp != B:
        tp = jnp.pad(tp, ((0, Bp - B), (0, 0)))

    kernel = functools.partial(dkd_kernel, batch_size=B)

    cost = pl.CostEstimate(
        flops=2 * Bp * Dp * (2 * Cp),
        transcendentals=2 * Bp * Cp + 8 * Bp,
        bytes_accessed=(Bp * Dp * 2 + Bp * 4 + Dp * 2 * Cp * 2 + 2 * Cp * 4
                        + Bp * Cp * out_itemsize + nb * 8 * 128 * 4),
    )

    partials, s_logits = pl.pallas_call(
        kernel,
        grid=(nb,),
        in_specs=[
            pl.BlockSpec((TB, Dp), lambda i: (i, 0)),       # x tile (default dbl-buffer)
            pl.BlockSpec((TB, 1), lambda i: (i, 0)),        # targets tile
            pl.BlockSpec((Dp, 2 * Cp), lambda i: (0, 0),    # fused weights: resident,
                         pipeline_mode=pl.Buffered(1)),     # single-buffered
            pl.BlockSpec((1, 2 * Cp), lambda i: (0, 0),     # fused biases: resident,
                         pipeline_mode=pl.Buffered(1)),     # single-buffered
        ],
        out_specs=(
            pl.BlockSpec((8, 128), lambda i: (i, 0)),       # per-tile partial loss
            pl.BlockSpec((TB, Cp), lambda i: (i, 0)),       # student logits (lane-dense)
        ),
        out_shape=(
            jax.ShapeDtypeStruct((nb * 8, 128), jnp.float32),
            jax.ShapeDtypeStruct((Bp, Cp), out_dtype),
        ),
        compiler_params=pltpu.CompilerParams(
            dimension_semantics=("parallel",),              # v7x: shard tiles across TCs
            vmem_limit_bytes=vmem_limit,
        ),
        cost_estimate=cost,
    )(xb, tp, wf, bf)

    loss = jnp.sum(partials[0::8, 0])                       # element [0,0] of each block
    return loss, s_logits[:B, :C]


def dkd_forward(x, targets, ws, bs, wt, bt, *, tile_b=256, logits_dtype=None):
    """Convenience wrapper that packs the params on every call."""
    wf, bf, C = dkd_pack_params(ws, bs, wt, bt)
    return dkd_forward_packed(x, targets, wf, bf, num_classes=C,
                              tile_b=tile_b, logits_dtype=logits_dtype)


if __name__ == "__main__":
    B, D, C = 8, 32, 16

    key = jax.random.PRNGKey(0)
    kx, kt, kws, kbs, kwt, kbt = jax.random.split(key, 6)

    x = jax.random.normal(kx, (B, D), dtype=jnp.float32)
    targets = jax.random.randint(kt, (B,), 0, C, dtype=jnp.int32)

    # deterministic "student" / "teacher" linear-head parameters
    # TODO(synk): the PyTorch module wraps arbitrary student/teacher backbones;
    # they are modeled here as linear classification heads.
    ws = 0.1 * jax.random.normal(kws, (D, C), dtype=jnp.float32)
    bs = 0.1 * jax.random.normal(kbs, (C,), dtype=jnp.float32)
    wt = 0.1 * jax.random.normal(kwt, (D, C), dtype=jnp.float32)
    bt = 0.1 * jax.random.normal(kbt, (C,), dtype=jnp.float32)

    # Pack [Ws|Wt] once (in real training, cache wf/bf across steps).
    wf, bf, num_classes = dkd_pack_params(ws, bs, wt, bt)
    loss, student_logits = dkd_forward_packed(x, targets, wf, bf,
                                              num_classes=num_classes)
    jax.block_until_ready((loss, student_logits))
    print("KERNEL_OK")
</pallas_src>

<mosaic_0001>
module attributes {stable_mosaic.version = 11 : i64} {
  func.func @dkd_kernel(%arg0: i32, %arg1: memref<8x256xbf16, #tpu.memory_space<vmem>>, %arg2: memref<8x1xi32, #tpu.memory_space<vmem>>, %arg3: memref<256x256xbf16, #tpu.memory_space<vmem>>, %arg4: memref<1x256xf32, #tpu.memory_space<vmem>>, %arg5: memref<8x128xf32, #tpu.memory_space<vmem>>, %arg6: memref<8x128xf32, #tpu.memory_space<vmem>>) attributes {dimension_semantics = [#tpu.dimension_semantics<parallel>], iteration_bounds = array<i64: 1>, scalar_prefetch = 0 : i64, scratch_operands = 0 : i64, tpu.core_type = #tpu.core_type<tc>, window_params = [{transform_indices = @transform_0, window_bounds = array<i64: 8, 256>}, {transform_indices = @transform_1, window_bounds = array<i64: 8, 1>}, {pipeline_mode = #tpu.pipeline_mode<synchronous>, transform_indices = @transform_2, window_bounds = array<i64: 256, 256>}, {pipeline_mode = #tpu.pipeline_mode<synchronous>, transform_indices = @transform_3, window_bounds = array<i64: 1, 256>}, {transform_indices = @transform_4, window_bounds = array<i64: 8, 128>}, {transform_indices = @transform_5, window_bounds = array<i64: 8, 128>}]} {
    %c0 = arith.constant 0 : index
    %c0_0 = arith.constant 0 : index
    %0 = vector.load %arg1[%c0, %c0_0] : memref<8x256xbf16, #tpu.memory_space<vmem>>, vector<8x256xbf16>
    %c0_1 = arith.constant 0 : index
    %c0_2 = arith.constant 0 : index
    %1 = vector.load %arg3[%c0_1, %c0_2] : memref<256x256xbf16, #tpu.memory_space<vmem>>, vector<256x256xbf16>
    %cst = arith.constant dense<0.000000e+00> : vector<8x256xf32>
    %2 = tpu.matmul %0, %1, %cst {dimension_numbers = #tpu.dot_dimension_numbers<[1], [0], [0], [1], [0, 0, 1, 1], [], []>} : vector<8x256xbf16>, vector<256x256xbf16>, vector<8x256xf32> -> vector<8x256xf32>
    %c0_3 = arith.constant 0 : index
    %c0_4 = arith.constant 0 : index
    %3 = vector.load %arg4[%c0_3, %c0_4] : memref<1x256xf32, #tpu.memory_space<vmem>>, vector<1x256xf32>
    %4 = vector.broadcast %3 : vector<1x256xf32> to vector<8x256xf32>
    %5 = arith.addf %2, %4 : vector<8x256xf32>
    %6 = vector.extract_strided_slice %5 {offsets = [0, 0], sizes = [8, 128], strides = [1, 1]} : vector<8x256xf32> to vector<8x128xf32>
    %7 = vector.extract_strided_slice %5 {offsets = [0, 128], sizes = [8, 128], strides = [1, 1]} : vector<8x256xf32> to vector<8x128xf32>
    %c0_5 = arith.constant 0 : index
    %c0_6 = arith.constant 0 : index
    %8 = vector.load %arg2[%c0_5, %c0_6] : memref<8x1xi32, #tpu.memory_space<vmem>>, vector<8x1xi32>
    %9 = tpu.iota {dimensions = array<i32: 1>} : vector<8x128xi32>
    %10 = vector.broadcast %8 : vector<8x1xi32> to vector<8x128xi32>
    %11 = arith.cmpi eq, %9, %10 : vector<8x128xi32>
    %c8_i32 = arith.constant 8 : i32
    %12 = arith.muli %arg0, %c8_i32 : i32
    %13 = tpu.iota {dimensions = array<i32: 0>} : vector<8x1xi32>
    %14 = vector.broadcast %12 : i32 to vector<8x1xi32>
    %15 = arith.addi %14, %13 : vector<8x1xi32>
    %c8_i32_7 = arith.constant 8 : i32
    %16 = vector.broadcast %c8_i32_7 : i32 to vector<8x1xi32>
    %17 = arith.cmpi slt, %15, %16 : vector<8x1xi32>
    %cst_8 = arith.constant dense<0xFF800000> : vector<8xf32>
    %18 = vector.multi_reduction <maximumf>, %6, %cst_8 [1] : vector<8x128xf32> to vector<8xf32>
    %19 = vector.shape_cast %18 : vector<8xf32> to vector<8x1xf32>
    %cst_9 = arith.constant dense<0xFF800000> : vector<8xf32>
    %20 = vector.multi_reduction <maximumf>, %7, %cst_9 [1] : vector<8x128xf32> to vector<8xf32>
    %21 = vector.shape_cast %20 : vector<8xf32> to vector<8x1xf32>
    %22 = vector.broadcast %19 : vector<8x1xf32> to vector<8x128xf32>
    %23 = arith.subf %6, %22 : vector<8x128xf32>
    %24 = math.exp %23 : vector<8x128xf32>
    %25 = vector.broadcast %21 : vector<8x1xf32> to vector<8x128xf32>
    %26 = arith.subf %7, %25 : vector<8x128xf32>
    %27 = math.exp %26 : vector<8x128xf32>
    %cst_10 = arith.constant dense<0.000000e+00> : vector<8xf32>
    %28 = vector.multi_reduction <add>, %24, %cst_10 [1] : vector<8x128xf32> to vector<8xf32>
    %29 = vector.shape_cast %28 : vector<8xf32> to vector<8x1xf32>
    %cst_11 = arith.constant dense<0.000000e+00> : vector<8xf32>
    %30 = vector.multi_reduction <add>, %27, %cst_11 [1] : vector<8x128xf32> to vector<8xf32>
    %31 = vector.shape_cast %30 : vector<8xf32> to vector<8x1xf32>
    %32 = math.log %29 : vector<8x1xf32>
    %33 = math.log %31 : vector<8x1xf32>
    %cst_12 = arith.constant 0.000000e+00 : f32
    %34 = vector.broadcast %cst_12 : f32 to vector<8x128xf32>
    %35 = arith.select %11, %34, %24 : vector<8x128xi1>, vector<8x128xf32>
    %cst_13 = arith.constant 0.000000e+00 : f32
    %36 = vector.broadcast %cst_13 : f32 to vector<8x128xf32>
    %37 = arith.select %11, %36, %27 : vector<8x128xi1>, vector<8x128xf32>
    %cst_14 = arith.constant dense<0.000000e+00> : vector<8xf32>
    %38 = vector.multi_reduction <add>, %35, %cst_14 [1] : vector<8x128xf32> to vector<8xf32>
    %39 = vector.shape_cast %38 : vector<8xf32> to vector<8x1xf32>
    %cst_15 = arith.constant 1.000000e-30 : f32
    %40 = vector.broadcast %cst_15 : f32 to vector<8x1xf32>
    %41 = arith.maximumf %39, %40 : vector<8x1xf32>
    %cst_16 = arith.constant dense<0.000000e+00> : vector<8xf32>
    %42 = vector.multi_reduction <add>, %37, %cst_16 [1] : vector<8x128xf32> to vector<8xf32>
    %43 = vector.shape_cast %42 : vector<8xf32> to vector<8x1xf32>
    %cst_17 = arith.constant 1.000000e-30 : f32
    %44 = vector.broadcast %cst_17 : f32 to vector<8x1xf32>
    %45 = arith.maximumf %43, %44 : vector<8x1xf32>
    %46 = math.log %41 : vector<8x1xf32>
    %47 = math.log %45 : vector<8x1xf32>
    %cst_18 = arith.constant 0.000000e+00 : f32
    %48 = vector.broadcast %cst_18 : f32 to vector<8x128xf32>
    %49 = arith.select %11, %6, %48 : vector<8x128xi1>, vector<8x128xf32>
    %cst_19 = arith.constant dense<0.000000e+00> : vector<8xf32>
    %50 = vector.multi_reduction <add>, %49, %cst_19 [1] : vector<8x128xf32> to vector<8xf32>
    %51 = vector.shape_cast %50 : vector<8xf32> to vector<8x1xf32>
    %cst_20 = arith.constant 0.000000e+00 : f32
    %52 = vector.broadcast %cst_20 : f32 to vector<8x128xf32>
    %53 = arith.select %11, %7, %52 : vector<8x128xi1>, vector<8x128xf32>
    %cst_21 = arith.constant dense<0.000000e+00> : vector<8xf32>
    %54 = vector.multi_reduction <add>, %53, %cst_21 [1] : vector<8x128xf32> to vector<8xf32>
    %55 = vector.shape_cast %54 : vector<8xf32> to vector<8x1xf32>
    %56 = arith.subf %55, %21 : vector<8x1xf32>
    %57 = math.exp %56 : vector<8x1xf32>
    %58 = arith.subf %51, %19 : vector<8x1xf32>
    %59 = arith.subf %58, %32 : vector<8x1xf32>
    %60 = arith.subf %55, %21 : vector<8x1xf32>
    %61 = arith.subf %60, %33 : vector<8x1xf32>
    %cst_22 = arith.constant 0.000000e+00 : f32
    %62 = vector.broadcast %cst_22 : f32 to vector<8x1xf32>
    %63 = arith.subf %62, %59 : vector<8x1xf32>
    %64 = arith.divf %57, %31 : vector<8x1xf32>
    %65 = arith.divf %45, %31 : vector<8x1xf32>
    %66 = arith.subf %61, %59 : vector<8x1xf32>
    %67 = arith.subf %47, %33 : vector<8x1xf32>
    %68 = arith.subf %46, %32 : vector<8x1xf32>
    %69 = arith.subf %67, %68 : vector<8x1xf32>
    %cst_23 = arith.constant 0.000000e+00 : f32
    %70 = vector.broadcast %cst_23 : f32 to vector<8x1xf32>
    %71 = arith.cmpf ogt, %64, %70 : vector<8x1xf32>
    %72 = arith.mulf %64, %66 : vector<8x1xf32>
    %cst_24 = arith.constant 0.000000e+00 : f32
    %73 = vector.broadcast %cst_24 : f32 to vector<8x1xf32>
    %74 = arith.select %71, %72, %73 : vector<8x1xi1>, vector<8x1xf32>
    %cst_25 = arith.constant 0.000000e+00 : f32
    %75 = vector.broadcast %cst_25 : f32 to vector<8x1xf32>
    %76 = arith.cmpf ogt, %65, %75 : vector<8x1xf32>
    %77 = arith.mulf %65, %69 : vector<8x1xf32>
    %cst_26 = arith.constant 0.000000e+00 : f32
    %78 = vector.broadcast %cst_26 : f32 to vector<8x1xf32>
    %79 = arith.select %76, %77, %78 : vector<8x1xi1>, vector<8x1xf32>
    %80 = arith.addf %74, %79 : vector<8x1xf32>
    %81 = arith.subf %19, %21 : vector<8x1xf32>
    %82 = arith.subf %46, %47 : vector<8x1xf32>
    %83 = arith.addf %81, %82 : vector<8x1xf32>
    %84 = arith.subf %7, %6 : vector<8x128xf32>
    %85 = arith.mulf %37, %84 : vector<8x128xf32>
    %cst_27 = arith.constant dense<0.000000e+00> : vector<8xf32>
    %86 = vector.multi_reduction <add>, %85, %cst_27 [1] : vector<8x128xf32> to vector<8xf32>
    %87 = vector.shape_cast %86 : vector<8xf32> to vector<8x1xf32>
    %88 = arith.divf %87, %45 : vector<8x1xf32>
    %89 = arith.addf %88, %83 : vector<8x1xf32>
    %cst_28 = arith.constant 5.000000e-01 : f32
    %90 = vector.broadcast %cst_28 : f32 to vector<8x1xf32>
    %91 = arith.mulf %90, %80 : vector<8x1xf32>
    %cst_29 = arith.constant 5.000000e-01 : f32
    %92 = vector.broadcast %cst_29 : f32 to vector<8x1xf32>
    %93 = arith.mulf %92, %89 : vector<8x1xf32>
    %94 = arith.addf %91, %93 : vector<8x1xf32>
    %cst_30 = arith.constant 5.000000e-01 : f32
    %95 = vector.broadcast %cst_30 : f32 to vector<8x1xf32>
    %96 = arith.mulf %95, %63 : vector<8x1xf32>
    %cst_31 = arith.constant 1.000000e+00 : f32
    %97 = vector.broadcast %cst_31 : f32 to vector<8x1xf32>
    %98 = arith.mulf %97, %94 : vector<8x1xf32>
    %99 = arith.addf %96, %98 : vector<8x1xf32>
    %cst_32 = arith.constant 0.000000e+00 : f32
    %100 = vector.broadcast %cst_32 : f32 to vector<8x1xf32>
    %101 = arith.select %17, %99, %100 : vector<8x1xi1>, vector<8x1xf32>
    %102 = vector.shape_cast %101 : vector<8x1xf32> to vector<1x8x1xf32>
    %cst_33 = arith.constant dense<0.000000e+00> : vector<1xf32>
    %103 = vector.multi_reduction <add>, %102, %cst_33 [1, 2] : vector<1x8x1xf32> to vector<1xf32>
    %104 = vector.shape_cast %103 : vector<1xf32> to vector<1x1x1xf32>
    %105 = vector.extract %104[0, 0, 0] : f32 from vector<1x1x1xf32>
    %cst_34 = arith.constant 8.000000e+00 : f32
    %106 = arith.divf %105, %cst_34 : f32
    %107 = vector.broadcast %106 : f32 to vector<8x128xf32>
    %c0_35 = arith.constant 0 : index
    %c0_36 = arith.constant 0 : index
    %108 = vector.load %arg5[%c0_35, %c0_36] : memref<8x128xf32, #tpu.memory_space<vmem>>, vector<8x128xf32>
    tpu.vector_store %arg5[%c0_35, %c0_36], %107 {strides = array<i32>} : memref<8x128xf32, #tpu.memory_space<vmem>>, vector<8x128xf32>,
    %c0_37 = arith.constant 0 : index
    %c0_38 = arith.constant 0 : index
    %109 = vector.load %arg6[%c0_37, %c0_38] : memref<8x128xf32, #tpu.memory_space<vmem>>, vector<8x128xf32>
    tpu.vector_store %arg6[%c0_37, %c0_38], %6 {strides = array<i32>} : memref<8x128xf32, #tpu.memory_space<vmem>>, vector<8x128xf32>,
    return
  }
  func.func @transform_0(%arg0: i32) -> (i32, i32) {
    %c0_i32 = arith.constant 0 : i32
    %c0_i32_0 = arith.constant 0 : i32
    return %arg0, %c0_i32 : i32, i32
  }
  func.func @transform_1(%arg0: i32) -> (i32, i32) {
    %c0_i32 = arith.constant 0 : i32
    %c0_i32_0 = arith.constant 0 : i32
    return %arg0, %c0_i32 : i32, i32
  }
  func.func @transform_2(%arg0: i32) -> (i32, i32) {
    %c0_i32 = arith.constant 0 : i32
    %c0_i32_0 = arith.constant 0 : i32
    %c0_i32_1 = arith.constant 0 : i32
    return %c0_i32, %c0_i32_0 : i32, i32
  }
  func.func @transform_3(%arg0: i32) -> (i32, i32) {
    %c0_i32 = arith.constant 0 : i32
    %c0_i32_0 = arith.constant 0 : i32
    %c0_i32_1 = arith.constant 0 : i32
    return %c0_i32, %c0_i32_0 : i32, i32
  }
  func.func @transform_4(%arg0: i32) -> (i32, i32) {
    %c0_i32 = arith.constant 0 : i32
    %c0_i32_0 = arith.constant 0 : i32
    return %arg0, %c0_i32 : i32, i32
  }
  func.func @transform_5(%arg0: i32) -> (i32, i32) {
    %c0_i32 = arith.constant 0 : i32
    %c0_i32_0 = arith.constant 0 : i32
    return %arg0, %c0_i32 : i32, i32
  }
}

</mosaic_0001>

<llo_original>
// kernel: dkd_forward_packed.1
$region0: #{dkd_forward_packed.1}
  #allocation0 [shape = 'u32[]', space=smem, size = 0x4, offset = 0x4, fixed_abs, tag = 'smem constant byte address 0x4 - core index']
  #allocation1 [shape = 'u32[144,128]{1,0:T(1,128)}', space=vmem, size = 0x12000, scoped, tag = 'internal scratch']
  %s0 = inlined_call_operand.vmem [shape: bf16[8,256], index: 0, kind: input, shape index: {}]
  %s1 = inlined_call_operand.vmem [shape: s32[8,1], index: 1, kind: input, shape index: {}]
  %s2 = inlined_call_operand.hbm [shape: bf16[256,256], index: 2, kind: input, shape index: {}]
  %s3 = inlined_call_operand.vmem [shape: f32[1,256], index: 3, kind: input, shape index: {}]
  %s4 = inlined_call_operand.vmem [shape: f32[8,128], index: 4, kind: output, shape index: {0}]
  %s5 = inlined_call_operand.hbm [shape: f32[8,128], index: 5, kind: output, shape index: {1}]
  %6 = xla_tuple %s4, %s5
  %s7 = sld [smem:[#allocation0]]
  $region38: #{dkd_forward_packed.1} parent=0
    _
  %s9 = ssub.s32 1, %s7
  %s10 = scalar_select 0, %s9, %s7
  $region1: #{dkd_forward_packed.1} parent=0
    #allocation2 [shape = 'u8[131072]{0}', space=vmem, size = 0x20000, scoped, tag = 'input window, operand 2, single buffered']
    #allocation3 [shape = 's32[1]{0}', space=sflag, size = 0x4, scoped, tag = 'scoped memory for dkd_forward_packed.1']
    #allocation4 [shape = 's32[1]{0}', space=sflag, size = 0x4, scoped, tag = 'scoped memory for dkd_forward_packed.1']
    #allocation5 [shape = 'u8[4096]{0}', space=vmem, size = 0x1000, scoped, tag = 'output window, operand 1, single buffered']
    %11 = vsyncpa [#allocation3], 0
    %12 = vsyncpa [#allocation4], 0
    // Predicated region
    $region2: #{dkd_forward_packed.1} parent=1 // pred_check
      _
    $region3: #{dkd_forward_packed.1} parent=1 // pred_check_branch
      %14 = sbr.rel (0) target = $region5
    $region4: #{dkd_forward_packed.1} parent=1 // pred_region
      _
    $region5: #{dkd_forward_packed.1} parent=1 // pred_fallthru
      _
    // Predicated region
    $region6: #{dkd_forward_packed.1} parent=1 // pred_check
      _
    $region7: #{dkd_forward_packed.1} parent=1 // pred_check_branch
      %16 = sbr.rel (0) target = $region9
    $region8: #{dkd_forward_packed.1} parent=1 // pred_region
      _
    $region9: #{dkd_forward_packed.1} parent=1 // pred_fallthru
      _
    // Predicated region
    $region10: #{dkd_forward_packed.1} parent=1 // pred_check
      _
    $region11: #{dkd_forward_packed.1} parent=1 // pred_check_branch
      %18 = sbr.rel (0) target = $region13
    $region12: #{dkd_forward_packed.1} parent=1 // pred_region
      %s20 = ssub.s32 4096, 4096
      %21 = vsyncadd [#allocation3], %s20
      %s22 = sshll.u32 [#allocation2], 4
      %s23 = int_to_ptr.vmem [resolvable:$true] %s22
      %28 = dma.hbm_to_vmem [thread:$0]  %s2, 4096, %s23, [#allocation3], 128, 128, 8
    $region13: #{dkd_forward_packed.1} parent=1 // pred_fallthru
      _
    // Predicated region
    $region14: #{dkd_forward_packed.1} parent=1 // pred_check
      _
    $region15: #{dkd_forward_packed.1} parent=1 // pred_check_branch
      %30 = sbr.rel (0) target = $region17
    $region16: #{dkd_forward_packed.1} parent=1 // pred_region
      _
    $region17: #{dkd_forward_packed.1} parent=1 // pred_fallthru
      _
    // Predicated region
    $region18: #{dkd_forward_packed.1} parent=1 // pred_check
      _
    $region19: #{dkd_forward_packed.1} parent=1 // pred_check_branch
      %32 = sbr.rel (0) target = $region21
    $region20: #{dkd_forward_packed.1} parent=1 // pred_region
      %33 = dma.done [#allocation3], 4096
    $region21: #{dkd_forward_packed.1} parent=1 // pred_fallthru
      _
    %v34 = vld [vmem:[%s0] sm:$0xff]
    %v35 = vld [vmem:[#allocation2] sm:$0xff]
    %v36 = vld [vmem:[#allocation2 + $0x8] sm:$0xff]
    %v37 = vld [vmem:[#allocation2 + $0x10] sm:$0xff]
    %v38 = vld [vmem:[#allocation2 + $0x18] sm:$0xff]
    %v39 = vld [vmem:[#allocation2 + $0x20] sm:$0xff]
    %v40 = vld [vmem:[#allocation2 + $0x28] sm:$0xff]
    %v41 = vld [vmem:[#allocation2 + $0x30] sm:$0xff]
    %v42 = vld [vmem:[#allocation2 + $0x38] sm:$0xff]
    %v43 = vld [vmem:[#allocation2 + $0x40] sm:$0xff]
    %v44 = vld [vmem:[#allocation2 + $0x48] sm:$0xff]
    %v45 = vld [vmem:[#allocation2 + $0x50] sm:$0xff]
    %v46 = vld [vmem:[#allocation2 + $0x58] sm:$0xff]
    %v47 = vld [vmem:[#allocation2 + $0x60] sm:$0xff]
    %v48 = vld [vmem:[#allocation2 + $0x68] sm:$0xff]
    %v49 = vld [vmem:[#allocation2 + $0x70] sm:$0xff]
    %v50 = vld [vmem:[#allocation2 + $0x78] sm:$0xff]
    %v51 = vld [vmem:[#allocation2 + $0x80] sm:$0xff]
    %v52 = vld [vmem:[#allocation2 + $0x88] sm:$0xff]
    %v53 = vld [vmem:[#allocation2 + $0x90] sm:$0xff]
    %v54 = vld [vmem:[#allocation2 + $0x98] sm:$0xff]
    %v55 = vld [vmem:[#allocation2 + $0xa0] sm:$0xff]
    %v56 = vld [vmem:[#allocation2 + $0xa8] sm:$0xff]
    %v57 = vld [vmem:[#allocation2 + $0xb0] sm:$0xff]
    %v58 = vld [vmem:[#allocation2 + $0xb8] sm:$0xff]
    %v59 = vld [vmem:[#allocation2 + $0xc0] sm:$0xff]
    %v60 = vld [vmem:[#allocation2 + $0xc8] sm:$0xff]
    %v61 = vld [vmem:[#allocation2 + $0xd0] sm:$0xff]
    %v62 = vld [vmem:[#allocation2 + $0xd8] sm:$0xff]
    %v63 = vld [vmem:[#allocation2 + $0xe0] sm:$0xff]
    %v64 = vld [vmem:[#allocation2 + $0xe8] sm:$0xff]
    %v65 = vld [vmem:[#allocation2 + $0xf0] sm:$0xff]
    %v66 = vld [vmem:[#allocation2 + $0xf8] sm:$0xff]
    %v67 = vld [vmem:[%s3] sm:$0x3]
    %v69 = vlaneseq
    %v70 = vshrl.u32 %v69, 7
    %v71 = vsub.s32 0, %v70
    %v72 = vrot.slane %v67, %v71
    %v73 = vlaneseq
    %v74 = vshrl.u32 %v73, 7
    %v75 = vsub.s32 1, %v74
    %v76 = vrot.slane %v67, %v75
    %v80 = vunpack.c.l.b16 %v34
    %v81 = vunpack.c.h.b16 %v34
    %v82 = vpack.c.b16 %v80, %v80
    %v83 = vpack.c.b16 %v81, %v81
    %v118 = vunpack.c.l.b16 %v35
    %v119 = vunpack.c.h.b16 %v35
    %v120 = vunpack.c.l.b16 %v36
    %v121 = vunpack.c.h.b16 %v36
    %v122 = vunpack.c.l.b16 %v37
    %v123 = vunpack.c.h.b16 %v37
    %v124 = vunpack.c.l.b16 %v38
    %v125 = vunpack.c.h.b16 %v38
    %v126 = vunpack.c.l.b16 %v39
    %v127 = vunpack.c.h.b16 %v39
    %v128 = vunpack.c.l.b16 %v40
    %v129 = vunpack.c.h.b16 %v40
    %v130 = vunpack.c.l.b16 %v41
    %v131 = vunpack.c.h.b16 %v41
    %v132 = vunpack.c.l.b16 %v42
    %v133 = vunpack.c.h.b16 %v42
    %v134 = vunpack.c.l.b16 %v43
    %v135 = vunpack.c.h.b16 %v43
    %v136 = vunpack.c.l.b16 %v44
    %v137 = vunpack.c.h.b16 %v44
    %v138 = vunpack.c.l.b16 %v45
    %v139 = vunpack.c.h.b16 %v45
    %v140 = vunpack.c.l.b16 %v46
    %v141 = vunpack.c.h.b16 %v46
    %v142 = vunpack.c.l.b16 %v47
    %v143 = vunpack.c.h.b16 %v47
    %v144 = vunpack.c.l.b16 %v48
    %v145 = vunpack.c.h.b16 %v48
    %v146 = vunpack.c.l.b16 %v49
    %v147 = vunpack.c.h.b16 %v49
    %v148 = vunpack.c.l.b16 %v50
    %v149 = vunpack.c.h.b16 %v50
    %v150 = vunpack.c.l.b16 %v51
    %v151 = vunpack.c.h.b16 %v51
    %v152 = vunpack.c.l.b16 %v52
    %v153 = vunpack.c.h.b16 %v52
    %v154 = vunpack.c.l.b16 %v53
    %v155 = vunpack.c.h.b16 %v53
    %v156 = vunpack.c.l.b16 %v54
    %v157 = vunpack.c.h.b16 %v54
    %v158 = vunpack.c.l.b16 %v55
    %v159 = vunpack.c.h.b16 %v55
    %v160 = vunpack.c.l.b16 %v56
    %v161 = vunpack.c.h.b16 %v56
    %v162 = vunpack.c.l.b16 %v57
    %v163 = vunpack.c.h.b16 %v57
    %v164 = vunpack.c.l.b16 %v58
    %v165 = vunpack.c.h.b16 %v58
    %v166 = vunpack.c.l.b16 %v59
    %v167 = vunpack.c.h.b16 %v59
    %v168 = vunpack.c.l.b16 %v60
    %v169 = vunpack.c.h.b16 %v60
    %v170 = vunpack.c.l.b16 %v61
    %v171 = vunpack.c.h.b16 %v61
    %v172 = vunpack.c.l.b16 %v62
    %v173 = vunpack.c.h.b16 %v62
    %v174 = vunpack.c.l.b16 %v63
    %v175 = vunpack.c.h.b16 %v63
    %v176 = vunpack.c.l.b16 %v64
    %v177 = vunpack.c.h.b16 %v64
    %v178 = vunpack.c.l.b16 %v65
    %v179 = vunpack.c.h.b16 %v65
    %v180 = vunpack.c.l.b16 %v66
    %v181 = vunpack.c.h.b16 %v66
    %v182 = vpack.c.b16 %v120, %v118
    %v183 = vpack.c.b16 %v121, %v119
    %v184 = vpack.c.b16 %v124, %v122
    %v185 = vpack.c.b16 %v125, %v123
    %v186 = vpack.c.b16 %v128, %v126
    %v187 = vpack.c.b16 %v129, %v127
    %v188 = vpack.c.b16 %v132, %v130
    %v189 = vpack.c.b16 %v133, %v131
    %v190 = vpack.c.b16 %v136, %v134
    %v191 = vpack.c.b16 %v137, %v135
    %v192 = vpack.c.b16 %v140, %v138
    %v193 = vpack.c.b16 %v141, %v139
    %v194 = vpack.c.b16 %v144, %v142
    %v195 = vpack.c.b16 %v145, %v143
    %v196 = vpack.c.b16 %v148, %v146
    %v197 = vpack.c.b16 %v149, %v147
    %v198 = vpack.c.b16 %v152, %v150
    %v199 = vpack.c.b16 %v153, %v151
    %v200 = vpack.c.b16 %v156, %v154
    %v201 = vpack.c.b16 %v157, %v155
    %v202 = vpack.c.b16 %v160, %v158
    %v203 = vpack.c.b16 %v161, %v159
    %v204 = vpack.c.b16 %v164, %v162
    %v205 = vpack.c.b16 %v165, %v163
    %v206 = vpack.c.b16 %v168, %v166
    %v207 = vpack.c.b16 %v169, %v167
    %v208 = vpack.c.b16 %v172, %v170
    %v209 = vpack.c.b16 %v173, %v171
    %v210 = vpack.c.b16 %v176, %v174
    %v211 = vpack.c.b16 %v177, %v175
    %v212 = vpack.c.b16 %v180, %v178
    %v213 = vpack.c.b16 %v181, %v179
    %246 = vmatprep.subr.bf16.mxu0 %v197
    %247 = vmatpush1.bf16.msra.mxu0 %v196
    %248 = vmatprep.subr.bf16.mxu0 %v195
    %249 = vmatpush1.bf16.msra.mxu0 %v194
    %250 = vmatprep.subr.bf16.mxu0 %v193
    %251 = vmatpush1.bf16.msra.mxu0 %v192
    %252 = vmatprep.subr.bf16.mxu0 %v191
    %253 = vmatpush1.bf16.msra.mxu0 %v190
    %254 = vmatprep.subr.bf16.mxu0 %v189
    %255 = vmatpush1.bf16.msra.mxu0 %v188
    %256 = vmatprep.subr.bf16.mxu0 %v187
    %257 = vmatpush1.bf16.msra.mxu0 %v186
    %258 = vmatprep.subr.bf16.mxu0 %v185
    %259 = vmatpush1.bf16.msra.mxu0 %v184
    %260 = vmatprep.subr.bf16.mxu0 %v183
    %261 = vmatpush1.bf16.msra.mxu0 %v182
    %262 = vmatprep.subr.bf16.mxu0 %v213
    %263 = vmatpush2.bf16.msra.mxu0 %v212
    %264 = vmatprep.subr.bf16.mxu0 %v211
    %265 = vmatpush2.bf16.msra.mxu0 %v210
    %266 = vmatprep.subr.bf16.mxu0 %v209
    %267 = vmatpush2.bf16.msra.mxu0 %v208
    %268 = vmatprep.subr.bf16.mxu0 %v207
    %269 = vmatpush2.bf16.msra.mxu0 %v206
    %270 = vmatprep.subr.bf16.mxu0 %v205
    %271 = vmatpush2.bf16.msra.mxu0 %v204
    %272 = vmatprep.subr.bf16.mxu0 %v203
    %273 = vmatpush2.bf16.msra.mxu0 %v202
    %274 = vmatprep.subr.bf16.mxu0 %v201
    %275 = vmatpush2.bf16.msra.mxu0 %v200
    %276 = vmatprep.subr.bf16.mxu0 %v199
    %277 = vmatpush2.bf16.msra.mxu0 %v198
    %278 = vmatprep.mubr.bf16.mxu0 %v83
    %279 = vmatmul.mubr.bf16.gmra.mxu0 %v82
    %v280 = vpop.f32.mrf.mxu0
    %v281 = vadd.f32 %v72, %v280
    %v282 = vpop.f32.mrf.mxu0
    %v283 = vadd.f32 %v76, %v282
    %v284 = vpop.f32.mrf.mxu0
    %v285 = vpop.f32.mrf.mxu0
    %286 = vdwg.mxu0
    %v287 = vld [vmem:[%s1] sm:$0xff]
    %v288 = vlaneseq
    %v289 = vand.u32 %v288, 127
    %290 = vset.pattern.permute.xlu0 0
    %291 = vperm.xlu0 %290, %v287
    %v292 = vpop.permute.xlu0 %291
    %vm293 = vcmp.eq.s32.totalorder %v289, %v292
    %s294 = smul.u32 0, 8
    %v295 = vlaneseq
    %v296 = vshrl.u32 %v295, 7
    %v297 = vstv %s294
    %v298 = vadd.s32 %v297, %v296
    %vm299 = vcmp.lt.s32.totalorder %v298, 8
    %300 = vmax.xlane.f32.xlu0 %v281
    %v301 = vpop.xlane.xlu0 %300
    %302 = vmax.xlane.f32.xlu0 %v283
    %v303 = vpop.xlane.xlu0 %302
    %v304 = vsub.f32 %v281, %v301
    %v305 = vmul.f32 %v304, 1.442695
    %v306 = vpow.pop %v305
    %v307 = vsub.f32 %v283, %v303
    %v308 = vmul.f32 %v307, 1.442695
    %v309 = vpow.pop %v308
    %310 = vadd.xlane.f32.xlu0 %v306
    %v311 = vpop.xlane.xlu0 %310
    %312 = vadd.xlane.f32.xlu0 %v309
    %v313 = vpop.xlane.xlu0 %312
    %v314 = vlog2.pop %v311
    %v315 = vmul.f32 %v314, 0.6931472
    %v316 = vlog2.pop %v313
    %v317 = vmul.f32 %v316, 0.6931472
    %v318 = vsel %vm293, 0.0, %v306
    %v319 = vsel %vm293, 0.0, %v309
    %320 = vadd.xlane.f32.xlu0 %v318
    %v321 = vpop.xlane.xlu0 %320
    %v322 = vmax.f32 %v321, 1e-30
    %323 = vadd.xlane.f32.xlu0 %v319
    %v324 = vpop.xlane.xlu0 %323
    %v325 = vmax.f32 %v324, 1e-30
    %v326 = vlog2.pop %v322
    %v327 = vmul.f32 %v326, 0.6931472
    %v328 = vlog2.pop %v325
    %v329 = vmul.f32 %v328, 0.6931472
    %v330 = vsel %vm293, %v281, 0.0
    %331 = vadd.xlane.f32.xlu0 %v330
    %v332 = vpop.xlane.xlu0 %331
    %v333 = vsel %vm293, %v283, 0.0
    %334 = vadd.xlane.f32.xlu0 %v333
    %v335 = vpop.xlane.xlu0 %334
    %v336 = vsub.f32 %v335, %v303
    %v337 = vmul.f32 %v336, 1.442695
    %v338 = vpow.pop %v337
    %v339 = vsub.f32 %v332, %v301
    %v340 = vsub.f32 %v339, %v315
    %v341 = vsub.f32 %v336, %v317
    %v342 = vsub.f32 0.0, %v340
    %v343 = vrcp.pop %v313
    %v344 = vmul.f32 %v338, %v343
    %v345 = vmul.f32 %v325, %v343
    %v346 = vsub.f32 %v341, %v340
    %v347 = vsub.f32 %v329, %v317
    %v348 = vsub.f32 %v327, %v315
    %v349 = vsub.f32 %v347, %v348
    %vm350 = vcmp.gt.f32.partialorder %v344, 0.0
    %v351 = vmul.f32 %v344, %v346
    %v352 = vsel %vm350, %v351, 0.0
    %vm353 = vcmp.gt.f32.partialorder %v345, 0.0
    %v354 = vmul.f32 %v345, %v349
    %v355 = vsel %vm353, %v354, 0.0
    %v356 = vadd.f32 %v352, %v355
    %v357 = vsub.f32 %v301, %v303
    %v358 = vsub.f32 %v327, %v329
    %v359 = vadd.f32 %v357, %v358
    %v360 = vsub.f32 %v283, %v281
    %v361 = vmul.f32 %v319, %v360
    %362 = vadd.xlane.f32.xlu0 %v361
    %v363 = vpop.xlane.xlu0 %362
    %v364 = vrcp.pop %v325
    %v365 = vmul.f32 %v363, %v364
    %v366 = vadd.f32 %v365, %v359
    %v367 = vmul.f32 %v356, 0.5
    %v368 = vmul.f32 %v366, 0.5
    %v369 = vadd.f32 %v367, %v368
    %v370 = vmul.f32 %v342, 0.5
    %v371 = vadd.f32 %v370, %v369
    %v372 = vsel %vm299, %v371, 0.0
    %vm373 = vcmask 7168
    %v374 = vsel %vm373, %v372, 0.0
    %375 = vadd.xlane.f32.xlu0 %v374
    %v376 = vpop.xlane.xlu0 %375
    %v377 = vrot.slane %v376, 4
    %v378 = vadd.f32 %v376, %v377
    %v379 = vrot.slane %v378, 2
    %v380 = vadd.f32 %v378, %v379
    %v381 = vrot.slane %v380, 1
    %v382 = vadd.f32 %v380, %v381
    %s383 = vtos %v382
    %v384 = vrcp.pop 8.0
    %s385 = vtos %v384
    %s386 = smul.f32 %s383, %s385
    %v387 = vstv %s386
    %388 = vst [vmem:[%s4] sm:$0xff] %v387
    %389 = vst [vmem:[#allocation5] sm:$0xff] %v281
    // Predicated region
    $region22: #{dkd_forward_packed.1} parent=1 // pred_check
      _
    $region23: #{dkd_forward_packed.1} parent=1 // pred_check_branch
      %391 = sbr.rel (0) target = $region25
    $region24: #{dkd_forward_packed.1} parent=1 // pred_region
      _
    $region25: #{dkd_forward_packed.1} parent=1 // pred_fallthru
      _
    // Predicated region
    $region26: #{dkd_forward_packed.1} parent=1 // pred_check
      _
    $region27: #{dkd_forward_packed.1} parent=1 // pred_check_branch
      %393 = sbr.rel (0) target = $region29
    $region28: #{dkd_forward_packed.1} parent=1 // pred_region
      %s395 = ssub.s32 128, 128
      %396 = vsyncadd [#allocation4], %s395
      %s398 = sshll.u32 [#allocation5], 4
      %s399 = int_to_ptr.vmem [resolvable:$true] %s398
      %401 = dma.vmem_to_hbm [thread:$0]  %s399, 128, %s5, [#allocation4]
    $region29: #{dkd_forward_packed.1} parent=1 // pred_fallthru
      _
    // Predicated region
    $region30: #{dkd_forward_packed.1} parent=1 // pred_check
      _
    $region31: #{dkd_forward_packed.1} parent=1 // pred_check_branch
      %403 = sbr.rel (0) target = $region33
    $region32: #{dkd_forward_packed.1} parent=1 // pred_region
      _
    $region33: #{dkd_forward_packed.1} parent=1 // pred_fallthru
      _
    // Predicated region
    $region34: #{dkd_forward_packed.1} parent=1 // pred_check
      _
    $region35: #{dkd_forward_packed.1} parent=1 // pred_check_branch
      %405 = sbr.rel (0) target = $region37
    $region36: #{dkd_forward_packed.1} parent=1 // pred_region
      %406 = dma.done [#allocation4], 128
    $region37: #{dkd_forward_packed.1} parent=1 // pred_fallthru
      _
    %407 = vsyncpa [#allocation3], 1
    %408 = vsyncpa [#allocation4], 1

</llo_original>
